<compile_context>
chip_gen: v6e
topology: v6e:2x2x1
jax: 0.10.0
libtpu: 0.0.40
codegen_flags: <defaults>
</compile_context>

<pallas_src>
import functools
import math

import jax
import jax.numpy as jnp
from jax.experimental import pallas as pl
from jax.experimental.pallas import tpu as pltpu


def cu_cell_kernel(step_ref,                      # SMEM (1,) int32 — used by index_maps only
                   prev_ref,                      # (bB, D)      f32
                   ctx_ref,                       # (bB, S, D)   compute dtype (streamed)
                   q_ref,                         # (bB, 2D)     f32
                   w_step_ref,                    # (2D, D)      selected step weight
                   b_step_ref,                    # (1, D)
                   w_cq_ref,                      # (2D, D)
                   b_cq_ref,                      # (1, D)
                   w_ca_ref,                      # (1, D)       row vector of the D->1 linear
                   out_ref,                       # (bB, D)      f32
                   *, compute_dtype, approx_recip):
    del step_ref  # consumed by the BlockSpec index_maps, not the body
    cd = compute_dtype
    f32 = jnp.float32

    prev = prev_ref[...]                          # (bB, D)
    q = q_ref[...]                                # (bB, 2D)
    ctx = ctx_ref[...]                            # (bB, S, D) — already in compute dtype

    # question_words_localized = step_trf[step](question_words)        (dense GEMM -> MXU)
    qwl = (jnp.dot(q.astype(cd), w_step_ref[...].astype(cd),
                   preferred_element_type=f32)
           + b_step_ref[...])                     # (bB, D) f32

    # cq = cq_lin(concat([prev_ctrl, qwl], dim=1))                      (dense GEMM -> MXU)
    # Concat folded into a split matmul: [prev | qwl] @ W == prev @ W[:D] + qwl @ W[D:]
    D = prev.shape[-1]
    w_cq = w_cq_ref[...].astype(cd)               # (2D, D)
    cq = (jnp.dot(prev.astype(cd), w_cq[:D, :], preferred_element_type=f32)
          + jnp.dot(qwl.astype(cd), w_cq[D:, :], preferred_element_type=f32)
          + b_cq_ref[...])                        # (bB, D) f32

    # Attention logits: ca[b,s] = sum_d (cq[b,d] * w_ca[d]) * ctx[b,s,d]
    # w_ca folded into cq; per-row GEMV -> VPU broadcast-multiply + lane (XLU) reduce.
    # Result is a lane-dense 2-D (bB, S) tensor.  (ca_lin bias is a constant logit
    # shift, i.e. a softmax no-op -> dropped here.)
    scaled_cq = (cq * w_ca_ref[...]).astype(ctx.dtype)                  # (bB, D)
    ca = jnp.sum((scaled_cq[:, None, :] * ctx).astype(f32), axis=-1)    # (bB, S) f32

    # cv = softmax over the sequence axis (f32, 2-D layout).
    m = jnp.max(ca, axis=-1, keepdims=True)       # (bB, 1)
    e = jnp.exp(ca - m)                           # (bB, S)
    inv = pl.reciprocal(jnp.sum(e, axis=-1, keepdims=True), approx=approx_recip)
    cv = e * inv                                  # (bB, S) f32

    # next_ctrl[b,d] = sum_s cv[b,s] * ctx[b,s,d]
    # Again a per-row GEMV -> VPU multiply + sublane (XLU) reduce, f32 accumulation.
    vals = cv.astype(ctx.dtype)[:, :, None] * ctx                        # (bB, S, D)
    nxt = jnp.sum(vals.astype(f32), axis=1)                              # (bB, D) f32
    out_ref[...] = nxt.astype(out_ref.dtype)


def _detect_vmem_bytes():
    """Per-TensorCore VMEM capacity (128 MiB on v5e/v6e, 64 MiB on v7x)."""
    try:
        info = pltpu.get_tpu_info()
        v = getattr(info, "vmem_capacity_bytes", None)
        if v:
            return int(v)
    except Exception:
        pass
    return 64 << 20                               # conservative (v7x-sized) fallback


def _pick_block_b(B, S, D, ctx_itemsize, vmem_bytes):
    """Largest batch block whose ctx slab fits the generation's VMEM budget,
    while keeping >=2 grid steps and MXU-friendly row counts."""
    if B <= 8:
        return B
    # Generation-aware per-block ctx slab target.
    slab_target = (16 << 20) if vmem_bytes >= (100 << 20) else (6 << 20)
    per_row = max(S * D * ctx_itemsize, 1)
    bb = slab_target // per_row
    bb = min(bb, -(-B // 2))                      # guarantee >= 2 grid steps (v7x 2 TCs / overlap)
    bb = min(bb, B, 2048)
    bb = max(bb, 8)
    if bb >= 256:
        bb = (bb // 256) * 256                    # fill 256-wide MXU rows (v6e/v7x)
    elif bb >= 128:
        bb = (bb // 128) * 128                    # fill 128-wide MXU rows (v5e)
    else:
        bb = (bb // 8) * 8
    return max(bb, 8)


def cu_cell(step, prev_ctrl, context_words, question_words, params,
            *, block_b=None, matmul_dtype=jnp.bfloat16):
    B, S, D = context_words.shape
    assert prev_ctrl.shape == (B, D)
    assert question_words.shape == (B, 2 * D)
    R = params["step_w"].shape[0]
    assert 0 <= step < R

    # Stream the (B, S, D) context in the compute dtype: it is the only large HBM
    # operand, so this halves its bytes on the HBM roofline for the bf16 path and
    # removes the in-kernel cast/copy of the biggest tensor.
    md = jnp.dtype(matmul_dtype)
    ctx = context_words if context_words.dtype == md else context_words.astype(md)

    vmem_bytes = _detect_vmem_bytes()
    if block_b is None:
        block_b = _pick_block_b(B, S, D, ctx.dtype.itemsize, vmem_bytes)
    grid = (pl.cdiv(B, block_b),)

    approx_recip = md == jnp.dtype(jnp.bfloat16)
    kernel = functools.partial(cu_cell_kernel,
                               compute_dtype=matmul_dtype,
                               approx_recip=bool(approx_recip))

    def build(weight_buffers):
        def wspec(shape, index_map):
            if weight_buffers is None:
                return pl.BlockSpec(shape, index_map)
            return pl.BlockSpec(shape, index_map,
                                pipeline_mode=pl.Buffered(weight_buffers))

        # index_maps receive (grid_i, step_prefetch_ref)
        grid_spec = pltpu.PrefetchScalarGridSpec(
            num_scalar_prefetch=1,
            grid=grid,
            in_specs=[
                pl.BlockSpec((block_b, D), lambda i, s: (i, 0)),          # prev_ctrl
                pl.BlockSpec((block_b, S, D), lambda i, s: (i, 0, 0)),    # context_words
                pl.BlockSpec((block_b, 2 * D), lambda i, s: (i, 0)),      # question_words
                wspec((None, 2 * D, D), lambda i, s: (s[0], 0, 0)),       # step_w[step]
                wspec((None, 1, D), lambda i, s: (s[0], 0, 0)),           # step_b[step]
                wspec((2 * D, D), lambda i, s: (0, 0)),                   # w_cq
                wspec((1, D), lambda i, s: (0, 0)),                       # b_cq
                wspec((1, D), lambda i, s: (0, 0)),                       # w_ca
            ],
            out_specs=pl.BlockSpec((block_b, D), lambda i, s: (i, 0)),
        )
        return pl.pallas_call(
            kernel,
            out_shape=jax.ShapeDtypeStruct((B, D), jnp.float32),
            grid_spec=grid_spec,
            compiler_params=pltpu.CompilerParams(
                dimension_semantics=("parallel",),
                # ~96 MiB on 128 MiB parts (v5e/v6e), ~48 MiB on v7x's 64 MiB.
                vmem_limit_bytes=int(vmem_bytes * 3 // 4),
            ),
        )

    step_arr = jnp.asarray([step], dtype=jnp.int32)
    args = (step_arr, prev_ctrl, ctx, question_words,
            params["step_w"], params["step_b"],
            params["w_cq"], params["b_cq"], params["w_ca"])
    try:
        # Weights have a constant index_map -> single-buffer them to free VMEM.
        return build(weight_buffers=1)(*args)
    except Exception:
        # Fallback for jax versions that reject pipeline_mode=pl.Buffered(1).
        return build(weight_buffers=None)(*args)


def make_params(key, ctrl_dim, recurrence_length):
    """Deterministic PyTorch-Linear-style init: U(-1/sqrt(fan_in), 1/sqrt(fan_in))."""
    D = ctrl_dim

    def lin(k, fan_in, fan_out):
        kw, kb = jax.random.split(k)
        bound = 1.0 / math.sqrt(fan_in)
        W = jax.random.uniform(kw, (fan_in, fan_out), jnp.float32, -bound, bound)
        b = jax.random.uniform(kb, (1, fan_out), jnp.float32, -bound, bound)
        return W, b

    keys = jax.random.split(key, recurrence_length + 2)
    step_ws, step_bs = [], []
    for r in range(recurrence_length):
        W, b = lin(keys[r], 2 * D, D)
        step_ws.append(W)
        step_bs.append(b)
    w_cq, b_cq = lin(keys[-2], 2 * D, D)
    w_ca, b_ca = lin(keys[-1], D, 1)

    return dict(
        step_w=jnp.stack(step_ws),     # (R, 2D, D)
        step_b=jnp.stack(step_bs),     # (R, 1, D)
        w_cq=w_cq,                     # (2D, D)
        b_cq=b_cq,                     # (1, D)
        w_ca=w_ca.T,                   # (1, D)  row vector of the D->1 ca_lin
        b_ca=b_ca.reshape(1, 1),       # (1, 1)  softmax-invariant; reference only
    )


def cu_cell_ref(step, prev_ctrl, context_words, question_words, params):
    """Pure-JAX reference mirroring the PyTorch forward exactly (incl. b_ca)."""
    qwl = question_words @ params["step_w"][step] + params["step_b"][step]
    c_concat = jnp.concatenate([prev_ctrl, qwl], axis=1)
    cq = c_concat @ params["w_cq"] + params["b_cq"]
    cw = jnp.einsum("bd,bsd->bsd", cq, context_words)
    ca = jnp.sum(cw * params["w_ca"][None], axis=-1) + params["b_ca"][0, 0]
    cv = jax.nn.softmax(ca, axis=1)
    return jnp.einsum("bs,bsd->bd", cv, context_words)


if __name__ == "__main__":
    B, S, D, R = 2, 8, 32, 3          # batch, seq_len, ctrl_dim, recurrence_length
    key = jax.random.PRNGKey(0)
    kp, k1, k2, k3 = jax.random.split(key, 4)

    params = make_params(kp, D, R)
    prev_ctrl = jax.random.normal(k1, (B, D), jnp.float32)
    context_words = jax.random.normal(k2, (B, S, D), jnp.float32)
    question_words = jax.random.normal(k3, (B, 2 * D), jnp.float32)

    step = 1
    ref = cu_cell_ref(step, prev_ctrl, context_words, question_words, params)

    # f32 compute path: tight check against the reference.
    out_f32 = cu_cell(step, prev_ctrl, context_words, question_words, params,
                      matmul_dtype=jnp.float32)
    jax.block_until_ready(out_f32)
    assert out_f32.shape == (B, D)
    assert jnp.allclose(out_f32, ref, atol=1e-4, rtol=1e-4), \
        "Pallas kernel (f32) mismatch vs reference"

    # bf16 streaming / MXU path (default production config): relaxed check.
    out_bf16 = cu_cell(step, prev_ctrl, context_words, question_words, params,
                       matmul_dtype=jnp.bfloat16)
    jax.block_until_ready(out_bf16)
    assert jnp.allclose(out_bf16, ref, atol=5e-2, rtol=5e-2), \
        "Pallas kernel (bf16) mismatch vs reference"

    print("KERNEL_OK")
</pallas_src>

<mosaic_0001>
module attributes {stable_mosaic.version = 11 : i64} {
  func.func @cu_cell_kernel(%arg0: i32, %arg1: memref<1xi32, #tpu.memory_space<smem>>, %arg2: memref<2x32xf32, #tpu.memory_space<vmem>>, %arg3: memref<2x8x32xf32, #tpu.memory_space<vmem>>, %arg4: memref<2x64xf32, #tpu.memory_space<vmem>>, %arg5: memref<1x64x32xf32, #tpu.memory_space<vmem>>, %arg6: memref<1x1x32xf32, #tpu.memory_space<vmem>>, %arg7: memref<64x32xf32, #tpu.memory_space<vmem>>, %arg8: memref<1x32xf32, #tpu.memory_space<vmem>>, %arg9: memref<1x32xf32, #tpu.memory_space<vmem>>, %arg10: memref<2x32xf32, #tpu.memory_space<vmem>>) attributes {dimension_semantics = [#tpu.dimension_semantics<parallel>], iteration_bounds = array<i64: 1>, scalar_prefetch = 1 : i64, scratch_operands = 0 : i64, tpu.core_type = #tpu.core_type<tc>, window_params = [{transform_indices = @transform_0, window_bounds = array<i64: 2, 32>}, {transform_indices = @transform_1, window_bounds = array<i64: 2, 8, 32>}, {transform_indices = @transform_2, window_bounds = array<i64: 2, 64>}, {pipeline_mode = #tpu.pipeline_mode<synchronous>, transform_indices = @transform_3, window_bounds = array<i64: 1, 64, 32>}, {pipeline_mode = #tpu.pipeline_mode<synchronous>, transform_indices = @transform_4, window_bounds = array<i64: 1, 1, 32>}, {pipeline_mode = #tpu.pipeline_mode<synchronous>, transform_indices = @transform_5, window_bounds = array<i64: 64, 32>}, {pipeline_mode = #tpu.pipeline_mode<synchronous>, transform_indices = @transform_6, window_bounds = array<i64: 1, 32>}, {pipeline_mode = #tpu.pipeline_mode<synchronous>, transform_indices = @transform_7, window_bounds = array<i64: 1, 32>}, {transform_indices = @transform_8, window_bounds = array<i64: 2, 32>}]} {
    %c0 = arith.constant 0 : index
    %c0_0 = arith.constant 0 : index
    %0 = vector.load %arg2[%c0, %c0_0] : memref<2x32xf32, #tpu.memory_space<vmem>>, vector<2x32xf32>
    %c0_1 = arith.constant 0 : index
    %c0_2 = arith.constant 0 : index
    %1 = vector.load %arg4[%c0_1, %c0_2] : memref<2x64xf32, #tpu.memory_space<vmem>>, vector<2x64xf32>
    %c0_3 = arith.constant 0 : index
    %c0_4 = arith.constant 0 : index
    %c0_5 = arith.constant 0 : index
    %2 = vector.load %arg3[%c0_3, %c0_4, %c0_5] : memref<2x8x32xf32, #tpu.memory_space<vmem>>, vector<2x8x32xf32>
    %c0_6 = arith.constant 0 : index
    %c0_7 = arith.constant 0 : index
    %c0_8 = arith.constant 0 : index
    %3 = vector.load %arg5[%c0_6, %c0_7, %c0_8] : memref<1x64x32xf32, #tpu.memory_space<vmem>>, vector<1x64x32xf32>
    %4 = vector.shape_cast %3 : vector<1x64x32xf32> to vector<64x32xf32>
    %cst = arith.constant dense<0.000000e+00> : vector<2x32xf32>
    %5 = tpu.matmul %1, %4, %cst {dimension_numbers = #tpu.dot_dimension_numbers<[1], [0], [0], [1], [0, 0, 1, 1], [], []>} : vector<2x64xf32>, vector<64x32xf32>, vector<2x32xf32> -> vector<2x32xf32>
    %c0_9 = arith.constant 0 : index
    %c0_10 = arith.constant 0 : index
    %c0_11 = arith.constant 0 : index
    %6 = vector.load %arg6[%c0_9, %c0_10, %c0_11] : memref<1x1x32xf32, #tpu.memory_space<vmem>>, vector<1x1x32xf32>
    %7 = vector.shape_cast %6 : vector<1x1x32xf32> to vector<1x32xf32>
    %8 = vector.broadcast %7 : vector<1x32xf32> to vector<2x32xf32>
    %9 = arith.addf %5, %8 : vector<2x32xf32>
    %c0_12 = arith.constant 0 : index
    %c0_13 = arith.constant 0 : index
    %10 = vector.load %arg7[%c0_12, %c0_13] : memref<64x32xf32, #tpu.memory_space<vmem>>, vector<64x32xf32>
    %11 = vector.extract_strided_slice %10 {offsets = [0, 0], sizes = [32, 32], strides = [1, 1]} : vector<64x32xf32> to vector<32x32xf32>
    %cst_14 = arith.constant dense<0.000000e+00> : vector<2x32xf32>
    %12 = tpu.matmul %0, %11, %cst_14 {dimension_numbers = #tpu.dot_dimension_numbers<[1], [0], [0], [1], [0, 0, 1, 1], [], []>} : vector<2x32xf32>, vector<32x32xf32>, vector<2x32xf32> -> vector<2x32xf32>
    %13 = vector.extract_strided_slice %10 {offsets = [32, 0], sizes = [32, 32], strides = [1, 1]} : vector<64x32xf32> to vector<32x32xf32>
    %cst_15 = arith.constant dense<0.000000e+00> : vector<2x32xf32>
    %14 = tpu.matmul %9, %13, %cst_15 {dimension_numbers = #tpu.dot_dimension_numbers<[1], [0], [0], [1], [0, 0, 1, 1], [], []>} : vector<2x32xf32>, vector<32x32xf32>, vector<2x32xf32> -> vector<2x32xf32>
    %15 = arith.addf %12, %14 : vector<2x32xf32>
    %c0_16 = arith.constant 0 : index
    %c0_17 = arith.constant 0 : index
    %16 = vector.load %arg8[%c0_16, %c0_17] : memref<1x32xf32, #tpu.memory_space<vmem>>, vector<1x32xf32>
    %17 = vector.broadcast %16 : vector<1x32xf32> to vector<2x32xf32>
    %18 = arith.addf %15, %17 : vector<2x32xf32>
    %c0_18 = arith.constant 0 : index
    %c0_19 = arith.constant 0 : index
    %19 = vector.load %arg9[%c0_18, %c0_19] : memref<1x32xf32, #tpu.memory_space<vmem>>, vector<1x32xf32>
    %20 = vector.broadcast %19 : vector<1x32xf32> to vector<2x32xf32>
    %21 = arith.mulf %18, %20 : vector<2x32xf32>
    %22 = vector.shape_cast %21 : vector<2x32xf32> to vector<2x1x32xf32>
    %23 = vector.broadcast %22 : vector<2x1x32xf32> to vector<2x8x32xf32>
    %24 = arith.mulf %23, %2 : vector<2x8x32xf32>
    %cst_20 = arith.constant dense<0.000000e+00> : vector<2x8xf32>
    %25 = vector.multi_reduction <add>, %24, %cst_20 [2] : vector<2x8x32xf32> to vector<2x8xf32>
    %cst_21 = arith.constant dense<0xFF800000> : vector<2xf32>
    %26 = vector.multi_reduction <maximumf>, %25, %cst_21 [1] : vector<2x8xf32> to vector<2xf32>
    %27 = vector.shape_cast %26 : vector<2xf32> to vector<2x1xf32>
    %28 = vector.broadcast %27 : vector<2x1xf32> to vector<2x8xf32>
    %29 = arith.subf %25, %28 : vector<2x8xf32>
    %30 = math.exp %29 : vector<2x8xf32>
    %cst_22 = arith.constant dense<0.000000e+00> : vector<2xf32>
    %31 = vector.multi_reduction <add>, %30, %cst_22 [1] : vector<2x8xf32> to vector<2xf32>
    %32 = vector.shape_cast %31 : vector<2xf32> to vector<2x1xf32>
    %33 = tpu.reciprocal %32 : vector<2x1xf32> -> vector<2x1xf32>
    %34 = vector.broadcast %33 : vector<2x1xf32> to vector<2x8xf32>
    %35 = arith.mulf %30, %34 : vector<2x8xf32>
    %36 = vector.shape_cast %35 : vector<2x8xf32> to vector<2x8x1xf32>
    %37 = vector.broadcast %36 : vector<2x8x1xf32> to vector<2x8x32xf32>
    %38 = arith.mulf %37, %2 : vector<2x8x32xf32>
    %cst_23 = arith.constant dense<0.000000e+00> : vector<2x32xf32>
    %39 = vector.multi_reduction <add>, %38, %cst_23 [1] : vector<2x8x32xf32> to vector<2x32xf32>
    %c0_24 = arith.constant 0 : index
    %c0_25 = arith.constant 0 : index
    %40 = vector.load %arg10[%c0_24, %c0_25] : memref<2x32xf32, #tpu.memory_space<vmem>>, vector<2x32xf32>
    tpu.vector_store %arg10[%c0_24, %c0_25], %39 {strides = array<i32>} : memref<2x32xf32, #tpu.memory_space<vmem>>, vector<2x32xf32>,
    return
  }
  func.func @transform_0(%arg0: i32, %arg1: memref<1xi32, #tpu.memory_space<smem>>) -> (i32, i32) {
    %c0_i32 = arith.constant 0 : i32
    %c0_i32_0 = arith.constant 0 : i32
    return %arg0, %c0_i32 : i32, i32
  }
  func.func @transform_1(%arg0: i32, %arg1: memref<1xi32, #tpu.memory_space<smem>>) -> (i32, i32, i32) {
    %c0_i32 = arith.constant 0 : i32
    %c0_i32_0 = arith.constant 0 : i32
    %c0_i32_1 = arith.constant 0 : i32
    return %arg0, %c0_i32, %c0_i32_0 : i32, i32, i32
  }
  func.func @transform_2(%arg0: i32, %arg1: memref<1xi32, #tpu.memory_space<smem>>) -> (i32, i32) {
    %c0_i32 = arith.constant 0 : i32
    %c0_i32_0 = arith.constant 0 : i32
    return %arg0, %c0_i32 : i32, i32
  }
  func.func @transform_3(%arg0: i32, %arg1: memref<1xi32, #tpu.memory_space<smem>>) -> (i32, i32, i32) {
    %c0 = arith.constant 0 : index
    %0 = memref.load %arg1[%c0] : memref<1xi32, #tpu.memory_space<smem>>
    %c0_i32 = arith.constant 0 : i32
    %c0_i32_0 = arith.constant 0 : i32
    %c0_i32_1 = arith.constant 0 : i32
    return %0, %c0_i32, %c0_i32_0 : i32, i32, i32
  }
  func.func @transform_4(%arg0: i32, %arg1: memref<1xi32, #tpu.memory_space<smem>>) -> (i32, i32, i32) {
    %c0 = arith.constant 0 : index
    %0 = memref.load %arg1[%c0] : memref<1xi32, #tpu.memory_space<smem>>
    %c0_i32 = arith.constant 0 : i32
    %c0_i32_0 = arith.constant 0 : i32
    %c0_i32_1 = arith.constant 0 : i32
    return %0, %c0_i32, %c0_i32_0 : i32, i32, i32
  }
  func.func @transform_5(%arg0: i32, %arg1: memref<1xi32, #tpu.memory_space<smem>>) -> (i32, i32) {
    %c0_i32 = arith.constant 0 : i32
    %c0_i32_0 = arith.constant 0 : i32
    %c0_i32_1 = arith.constant 0 : i32
    return %c0_i32, %c0_i32_0 : i32, i32
  }
  func.func @transform_6(%arg0: i32, %arg1: memref<1xi32, #tpu.memory_space<smem>>) -> (i32, i32) {
    %c0_i32 = arith.constant 0 : i32
    %c0_i32_0 = arith.constant 0 : i32
    %c0_i32_1 = arith.constant 0 : i32
    return %c0_i32, %c0_i32_0 : i32, i32
  }
  func.func @transform_7(%arg0: i32, %arg1: memref<1xi32, #tpu.memory_space<smem>>) -> (i32, i32) {
    %c0_i32 = arith.constant 0 : i32
    %c0_i32_0 = arith.constant 0 : i32
    %c0_i32_1 = arith.constant 0 : i32
    return %c0_i32, %c0_i32_0 : i32, i32
  }
  func.func @transform_8(%arg0: i32, %arg1: memref<1xi32, #tpu.memory_space<smem>>) -> (i32, i32) {
    %c0_i32 = arith.constant 0 : i32
    %c0_i32_0 = arith.constant 0 : i32
    return %arg0, %c0_i32 : i32, i32
  }
}

module attributes {stable_mosaic.version = 11 : i64} {
  func.func @cu_cell_kernel(%arg0: i32, %arg1: memref<1xi32, #tpu.memory_space<smem>>, %arg2: memref<2x32xf32, #tpu.memory_space<vmem>>, %arg3: memref<2x8x32xf32, #tpu.memory_space<vmem>>, %arg4: memref<2x64xf32, #tpu.memory_space<vmem>>, %arg5: memref<1x64x32xf32, #tpu.memory_space<vmem>>, %arg6: memref<1x1x32xf32, #tpu.memory_space<vmem>>, %arg7: memref<64x32xf32, #tpu.memory_space<vmem>>, %arg8: memref<1x32xf32, #tpu.memory_space<vmem>>, %arg9: memref<1x32xf32, #tpu.memory_space<vmem>>, %arg10: memref<2x32xf32, #tpu.memory_space<vmem>>) attributes {dimension_semantics = [#tpu.dimension_semantics<parallel>], iteration_bounds = array<i64: 1>, scalar_prefetch = 1 : i64, scratch_operands = 0 : i64, tpu.core_type = #tpu.core_type<tc>, window_params = [{transform_indices = @transform_0, window_bounds = array<i64: 2, 32>}, {transform_indices = @transform_1, window_bounds = array<i64: 2, 8, 32>}, {transform_indices = @transform_2, window_bounds = array<i64: 2, 64>}, {transform_indices = @transform_3, window_bounds = array<i64: 1, 64, 32>}, {transform_indices = @transform_4, window_bounds = array<i64: 1, 1, 32>}, {pipeline_mode = #tpu.pipeline_mode<synchronous>, transform_indices = @transform_5, window_bounds = array<i64: 64, 32>}, {pipeline_mode = #tpu.pipeline_mode<synchronous>, transform_indices = @transform_6, window_bounds = array<i64: 1, 32>}, {pipeline_mode = #tpu.pipeline_mode<synchronous>, transform_indices = @transform_7, window_bounds = array<i64: 1, 32>}, {transform_indices = @transform_8, window_bounds = array<i64: 2, 32>}]} {
    %c0 = arith.constant 0 : index
    %c0_0 = arith.constant 0 : index
    %0 = vector.load %arg2[%c0, %c0_0] : memref<2x32xf32, #tpu.memory_space<vmem>>, vector<2x32xf32>
    %c0_1 = arith.constant 0 : index
    %c0_2 = arith.constant 0 : index
    %1 = vector.load %arg4[%c0_1, %c0_2] : memref<2x64xf32, #tpu.memory_space<vmem>>, vector<2x64xf32>
    %c0_3 = arith.constant 0 : index
    %c0_4 = arith.constant 0 : index
    %c0_5 = arith.constant 0 : index
    %2 = vector.load %arg3[%c0_3, %c0_4, %c0_5] : memref<2x8x32xf32, #tpu.memory_space<vmem>>, vector<2x8x32xf32>
    %c0_6 = arith.constant 0 : index
    %c0_7 = arith.constant 0 : index
    %c0_8 = arith.constant 0 : index
    %3 = vector.load %arg5[%c0_6, %c0_7, %c0_8] : memref<1x64x32xf32, #tpu.memory_space<vmem>>, vector<1x64x32xf32>
    %4 = vector.shape_cast %3 : vector<1x64x32xf32> to vector<64x32xf32>
    %cst = arith.constant dense<0.000000e+00> : vector<2x32xf32>
    %5 = tpu.matmul %1, %4, %cst {dimension_numbers = #tpu.dot_dimension_numbers<[1], [0], [0], [1], [0, 0, 1, 1], [], []>} : vector<2x64xf32>, vector<64x32xf32>, vector<2x32xf32> -> vector<2x32xf32>
    %c0_9 = arith.constant 0 : index
    %c0_10 = arith.constant 0 : index
    %c0_11 = arith.constant 0 : index
    %6 = vector.load %arg6[%c0_9, %c0_10, %c0_11] : memref<1x1x32xf32, #tpu.memory_space<vmem>>, vector<1x1x32xf32>
    %7 = vector.shape_cast %6 : vector<1x1x32xf32> to vector<1x32xf32>
    %8 = vector.broadcast %7 : vector<1x32xf32> to vector<2x32xf32>
    %9 = arith.addf %5, %8 : vector<2x32xf32>
    %c0_12 = arith.constant 0 : index
    %c0_13 = arith.constant 0 : index
    %10 = vector.load %arg7[%c0_12, %c0_13] : memref<64x32xf32, #tpu.memory_space<vmem>>, vector<64x32xf32>
    %11 = vector.extract_strided_slice %10 {offsets = [0, 0], sizes = [32, 32], strides = [1, 1]} : vector<64x32xf32> to vector<32x32xf32>
    %cst_14 = arith.constant dense<0.000000e+00> : vector<2x32xf32>
    %12 = tpu.matmul %0, %11, %cst_14 {dimension_numbers = #tpu.dot_dimension_numbers<[1], [0], [0], [1], [0, 0, 1, 1], [], []>} : vector<2x32xf32>, vector<32x32xf32>, vector<2x32xf32> -> vector<2x32xf32>
    %13 = vector.extract_strided_slice %10 {offsets = [32, 0], sizes = [32, 32], strides = [1, 1]} : vector<64x32xf32> to vector<32x32xf32>
    %cst_15 = arith.constant dense<0.000000e+00> : vector<2x32xf32>
    %14 = tpu.matmul %9, %13, %cst_15 {dimension_numbers = #tpu.dot_dimension_numbers<[1], [0], [0], [1], [0, 0, 1, 1], [], []>} : vector<2x32xf32>, vector<32x32xf32>, vector<2x32xf32> -> vector<2x32xf32>
    %15 = arith.addf %12, %14 : vector<2x32xf32>
    %c0_16 = arith.constant 0 : index
    %c0_17 = arith.constant 0 : index
    %16 = vector.load %arg8[%c0_16, %c0_17] : memref<1x32xf32, #tpu.memory_space<vmem>>, vector<1x32xf32>
    %17 = vector.broadcast %16 : vector<1x32xf32> to vector<2x32xf32>
    %18 = arith.addf %15, %17 : vector<2x32xf32>
    %c0_18 = arith.constant 0 : index
    %c0_19 = arith.constant 0 : index
    %19 = vector.load %arg9[%c0_18, %c0_19] : memref<1x32xf32, #tpu.memory_space<vmem>>, vector<1x32xf32>
    %20 = vector.broadcast %19 : vector<1x32xf32> to vector<2x32xf32>
    %21 = arith.mulf %18, %20 : vector<2x32xf32>
    %22 = vector.shape_cast %21 : vector<2x32xf32> to vector<2x1x32xf32>
    %23 = vector.broadcast %22 : vector<2x1x32xf32> to vector<2x8x32xf32>
    %24 = arith.mulf %23, %2 : vector<2x8x32xf32>
    %cst_20 = arith.constant dense<0.000000e+00> : vector<2x8xf32>
    %25 = vector.multi_reduction <add>, %24, %cst_20 [2] : vector<2x8x32xf32> to vector<2x8xf32>
    %cst_21 = arith.constant dense<0xFF800000> : vector<2xf32>
    %26 = vector.multi_reduction <maximumf>, %25, %cst_21 [1] : vector<2x8xf32> to vector<2xf32>
    %27 = vector.shape_cast %26 : vector<2xf32> to vector<2x1xf32>
    %28 = vector.broadcast %27 : vector<2x1xf32> to vector<2x8xf32>
    %29 = arith.subf %25, %28 : vector<2x8xf32>
    %30 = math.exp %29 : vector<2x8xf32>
    %cst_22 = arith.constant dense<0.000000e+00> : vector<2xf32>
    %31 = vector.multi_reduction <add>, %30, %cst_22 [1] : vector<2x8xf32> to vector<2xf32>
    %32 = vector.shape_cast %31 : vector<2xf32> to vector<2x1xf32>
    %33 = tpu.reciprocal %32 : vector<2x1xf32> -> vector<2x1xf32>
    %34 = vector.broadcast %33 : vector<2x1xf32> to vector<2x8xf32>
    %35 = arith.mulf %30, %34 : vector<2x8xf32>
    %36 = vector.shape_cast %35 : vector<2x8xf32> to vector<2x8x1xf32>
    %37 = vector.broadcast %36 : vector<2x8x1xf32> to vector<2x8x32xf32>
    %38 = arith.mulf %37, %2 : vector<2x8x32xf32>
    %cst_23 = arith.constant dense<0.000000e+00> : vector<2x32xf32>
    %39 = vector.multi_reduction <add>, %38, %cst_23 [1] : vector<2x8x32xf32> to vector<2x32xf32>
    %c0_24 = arith.constant 0 : index
    %c0_25 = arith.constant 0 : index
    %40 = vector.load %arg10[%c0_24, %c0_25] : memref<2x32xf32, #tpu.memory_space<vmem>>, vector<2x32xf32>
    tpu.vector_store %arg10[%c0_24, %c0_25], %39 {strides = array<i32>} : memref<2x32xf32, #tpu.memory_space<vmem>>, vector<2x32xf32>,
    return
  }
  func.func @transform_0(%arg0: i32, %arg1: memref<1xi32, #tpu.memory_space<smem>>) -> (i32, i32) {
    %c0_i32 = arith.constant 0 : i32
    %c0_i32_0 = arith.constant 0 : i32
    return %arg0, %c0_i32 : i32, i32
  }
  func.func @transform_1(%arg0: i32, %arg1: memref<1xi32, #tpu.memory_space<smem>>) -> (i32, i32, i32) {
    %c0_i32 = arith.constant 0 : i32
    %c0_i32_0 = arith.constant 0 : i32
    %c0_i32_1 = arith.constant 0 : i32
    return %arg0, %c0_i32, %c0_i32_0 : i32, i32, i32
  }
  func.func @transform_2(%arg0: i32, %arg1: memref<1xi32, #tpu.memory_space<smem>>) -> (i32, i32) {
    %c0_i32 = arith.constant 0 : i32
    %c0_i32_0 = arith.constant 0 : i32
    return %arg0, %c0_i32 : i32, i32
  }
  func.func @transform_3(%arg0: i32, %arg1: memref<1xi32, #tpu.memory_space<smem>>) -> (i32, i32, i32) {
    %c0 = arith.constant 0 : index
    %0 = memref.load %arg1[%c0] : memref<1xi32, #tpu.memory_space<smem>>
    %c0_i32 = arith.constant 0 : i32
    %c0_i32_0 = arith.constant 0 : i32
    %c0_i32_1 = arith.constant 0 : i32
    return %0, %c0_i32, %c0_i32_0 : i32, i32, i32
  }
  func.func @transform_4(%arg0: i32, %arg1: memref<1xi32, #tpu.memory_space<smem>>) -> (i32, i32, i32) {
    %c0 = arith.constant 0 : index
    %0 = memref.load %arg1[%c0] : memref<1xi32, #tpu.memory_space<smem>>
    %c0_i32 = arith.constant 0 : i32
    %c0_i32_0 = arith.constant 0 : i32
    %c0_i32_1 = arith.constant 0 : i32
    return %0, %c0_i32, %c0_i32_0 : i32, i32, i32
  }
  func.func @transform_5(%arg0: i32, %arg1: memref<1xi32, #tpu.memory_space<smem>>) -> (i32, i32) {
    %c0_i32 = arith.constant 0 : i32
    %c0_i32_0 = arith.constant 0 : i32
    %c0_i32_1 = arith.constant 0 : i32
    return %c0_i32, %c0_i32_0 : i32, i32
  }
  func.func @transform_6(%arg0: i32, %arg1: memref<1xi32, #tpu.memory_space<smem>>) -> (i32, i32) {
    %c0_i32 = arith.constant 0 : i32
    %c0_i32_0 = arith.constant 0 : i32
    %c0_i32_1 = arith.constant 0 : i32
    return %c0_i32, %c0_i32_0 : i32, i32
  }
  func.func @transform_7(%arg0: i32, %arg1: memref<1xi32, #tpu.memory_space<smem>>) -> (i32, i32) {
    %c0_i32 = arith.constant 0 : i32
    %c0_i32_0 = arith.constant 0 : i32
    %c0_i32_1 = arith.constant 0 : i32
    return %c0_i32, %c0_i32_0 : i32, i32
  }
  func.func @transform_8(%arg0: i32, %arg1: memref<1xi32, #tpu.memory_space<smem>>) -> (i32, i32) {
    %c0_i32 = arith.constant 0 : i32
    %c0_i32_0 = arith.constant 0 : i32
    return %arg0, %c0_i32 : i32, i32
  }
}

</mosaic_0001>

<llo_original>
// kernel: tpu_custom_call.1
$region0: #{tpu_custom_call.1}
  #allocation0 [shape = 'u32[]', space=smem, size = 0x4, offset = 0x4, fixed_abs, tag = 'smem constant byte address 0x4 - core index']
  #allocation1 [shape = 'u32[144,128]{1,0:T(1,128)}', space=vmem, size = 0x12000, scoped, tag = 'internal scratch']
  #allocation2 [shape = 's32[1]{0}', space=sflag, size = 0x4, scoped, tag = 'scoped memory for tpu_custom_call.1']
  #allocation3 [shape = 's32[1]{0:T(128)S(6)}', space=smem, size = 0x200, scoped, tag = 'prefetched SMEM operand 0']
  %s0 = inlined_call_operand.<no memory space> [shape: s32[1], index: 0, kind: input, shape index: {}]
  %s1 = inlined_call_operand.vmem [shape: f32[2,32], index: 1, kind: input, shape index: {}]
  %s2 = inlined_call_operand.vmem [shape: f32[2,8,32], index: 2, kind: input, shape index: {}]
  %s3 = inlined_call_operand.vmem [shape: f32[2,64], index: 3, kind: input, shape index: {}]
  %s4 = inlined_call_operand.vmem [shape: f32[3,64,32], index: 4, kind: input, shape index: {}]
  %s5 = inlined_call_operand.vmem [shape: f32[3,1,32], index: 5, kind: input, shape index: {}]
  %s6 = inlined_call_operand.vmem [shape: f32[64,32], index: 6, kind: input, shape index: {}]
  %s7 = inlined_call_operand.vmem [shape: f32[1,32], index: 7, kind: input, shape index: {}]
  %s8 = inlined_call_operand.vmem [shape: f32[1,32], index: 8, kind: input, shape index: {}]
  %s9 = inlined_call_operand.hbm [shape: f32[2,32], index: 9, kind: output, shape index: {}]
  %s10 = sld [smem:[#allocation0]]
  $region42: #{tpu_custom_call.1} parent=0
    _
  %s12 = ssub.s32 1, %s10
  %s13 = scalar_select 0, %s12, %s10
  %14 = sst [smem:[#allocation3]] %s0
  $region1: #{tpu_custom_call.1} parent=0
    #allocation4 [shape = 'u8[1024]{0}', space=vmem, size = 0x400, scoped, tag = 'output window, operand 0, single buffered']
    #allocation5 [shape = 's32[1]{0}', space=sflag, size = 0x4, scoped, tag = 'scoped memory for tpu_custom_call.1']
    %15 = vsyncpa [#allocation5], 0
    // Predicated region
    $region2: #{tpu_custom_call.1} parent=1 // pred_check
      _
    $region3: #{tpu_custom_call.1} parent=1 // pred_check_branch
      %17 = sbr.rel (0) target = $region5
    $region4: #{tpu_custom_call.1} parent=1 // pred_region
      _
    $region5: #{tpu_custom_call.1} parent=1 // pred_fallthru
      _
    // Predicated region
    $region6: #{tpu_custom_call.1} parent=1 // pred_check
      _
    $region7: #{tpu_custom_call.1} parent=1 // pred_check_branch
      %19 = sbr.rel (0) target = $region9
    $region8: #{tpu_custom_call.1} parent=1 // pred_region
      _
    $region9: #{tpu_custom_call.1} parent=1 // pred_fallthru
      _
    // Predicated region
    $region10: #{tpu_custom_call.1} parent=1 // pred_check
      _
    $region11: #{tpu_custom_call.1} parent=1 // pred_check_branch
      %21 = sbr.rel (0) target = $region13
    $region12: #{tpu_custom_call.1} parent=1 // pred_region
      _
    $region13: #{tpu_custom_call.1} parent=1 // pred_fallthru
      _
    // Predicated region
    $region14: #{tpu_custom_call.1} parent=1 // pred_check
      _
    $region15: #{tpu_custom_call.1} parent=1 // pred_check_branch
      %23 = sbr.rel (0) target = $region17
    $region16: #{tpu_custom_call.1} parent=1 // pred_region
      %s24 = sld [smem:[#allocation3]]
      %p25 = scmp.lt.s32.totalorder %s24, 2
      %s26 = scalar_select %p25, %s24, 2
      %s27 = smul.addr %s26, 8
      %s28 = smul.addr %s27, 8
      %s29 = scalar_lea.vmem %s4, %s28
      %s30 = sld [smem:[#allocation3]]
    $region17: #{tpu_custom_call.1} parent=1 // pred_fallthru
      _
    // Predicated region
    $region18: #{tpu_custom_call.1} parent=1 // pred_check
      _
    $region19: #{tpu_custom_call.1} parent=1 // pred_check_branch
      %32 = sbr.rel (0) target = $region21
    $region20: #{tpu_custom_call.1} parent=1 // pred_region
      %s33 = sld [smem:[#allocation3]]
      %p34 = scmp.lt.s32.totalorder %s33, 2
      %s35 = scalar_select %p34, %s33, 2
      %s36 = scalar_lea.vmem %s5, %s35
      %s37 = sld [smem:[#allocation3]]
    $region21: #{tpu_custom_call.1} parent=1 // pred_fallthru
      _
    // Predicated region
    $region22: #{tpu_custom_call.1} parent=1 // pred_check
      _
    $region23: #{tpu_custom_call.1} parent=1 // pred_check_branch
      %39 = sbr.rel (0) target = $region25
    $region24: #{tpu_custom_call.1} parent=1 // pred_region
      _
    $region25: #{tpu_custom_call.1} parent=1 // pred_fallthru
      _
    // Predicated region
    $region26: #{tpu_custom_call.1} parent=1 // pred_check
      _
    $region27: #{tpu_custom_call.1} parent=1 // pred_check_branch
      %41 = sbr.rel (0) target = $region29
    $region28: #{tpu_custom_call.1} parent=1 // pred_region
      _
    $region29: #{tpu_custom_call.1} parent=1 // pred_fallthru
      _
    // Predicated region
    $region30: #{tpu_custom_call.1} parent=1 // pred_check
      _
    $region31: #{tpu_custom_call.1} parent=1 // pred_check_branch
      %43 = sbr.rel (0) target = $region33
    $region32: #{tpu_custom_call.1} parent=1 // pred_region
      _
    $region33: #{tpu_custom_call.1} parent=1 // pred_fallthru
      _
    %s44 = sld [smem:[#allocation3]]
    %p45 = scmp.lt.s32.totalorder %s44, 2
    %s46 = scalar_select %p45, %s44, 2
    %s47 = smul.addr %s46, 8
    %s48 = smul.addr %s47, 8
    %s49 = scalar_lea.vmem %s4, %s48
    %s50 = sld [smem:[#allocation3]]
    %p51 = scmp.lt.s32.totalorder %s50, 2
    %s52 = scalar_select %p51, %s50, 2
    %s53 = scalar_lea.vmem %s5, %s52
    %s54 = sld [smem:[#allocation3]]
    %p55 = scmp.lt.s32.totalorder %s54, 2
    %s56 = scalar_select %p55, %s54, 2
    %s57 = smul.addr %s56, 8
    %s58 = smul.addr %s57, 8
    %s59 = scalar_lea.vmem %s4, %s58
    %s60 = sld [smem:[#allocation3]]
    %s61 = sld [smem:[#allocation3]]
    %p62 = scmp.lt.s32.totalorder %s61, 2
    %s63 = scalar_select %p62, %s61, 2
    %s64 = scalar_lea.vmem %s5, %s63
    %s65 = sld [smem:[#allocation3]]
    %v66 = vld [vmem:[%s1] sm:$0x3]
    %v67 = vld [vmem:[%s3] sm:$0x3]
    %v68 = vld [vmem:[%s2] sm:$0xff]
    %v69 = vld [vmem:[%s2 + $0x8] sm:$0xff]
    %v70 = vld [vmem:[%s59] sm:$0xff]
    %v71 = vld [vmem:[%s59 + $0x8] sm:$0xff]
    %v72 = vld [vmem:[%s59 + $0x10] sm:$0xff]
    %v73 = vld [vmem:[%s59 + $0x18] sm:$0xff]
    %v74 = vld [vmem:[%s59 + $0x20] sm:$0xff]
    %v75 = vld [vmem:[%s59 + $0x28] sm:$0xff]
    %v76 = vld [vmem:[%s59 + $0x30] sm:$0xff]
    %v77 = vld [vmem:[%s59 + $0x38] sm:$0xff]
    %v78 = vld [vmem:[%s64] sm:$0x1]
    %v80 = vlaneseq
    %v81 = vshrl.u32 %v80, 7
    %v82 = vsub.s32 0, %v81
    %v83 = vrot.slane %v78, %v82
    %vm85 = vcmask 523264
    %v87 = vsel %vm85, %v67, 0
    %89 = vmatprep.subr.mxu0 0.0
    %90 = vmatpush1.msra.mxu0 0.0
    %91 = vmatprep.subr.mxu0 0.0
    %92 = vmatpush1.msra.mxu0 0.0
    %93 = vmatprep.subr.mxu0 0.0
    %94 = vmatpush1.msra.mxu0 0.0
    %95 = vmatprep.subr.mxu0 0.0
    %96 = vmatpush1.msra.mxu0 0.0
    %97 = vmatprep.subr.mxu0 0.0
    %98 = vmatpush1.msra.mxu0 0.0
    %99 = vmatprep.subr.mxu0 0.0
    %100 = vmatpush1.msra.mxu0 0.0
    %101 = vmatprep.subr.mxu0 0.0
    %102 = vmatpush1.msra.mxu0 0.0
    %103 = vmatprep.subr.mxu0 0.0
    %104 = vmatpush1.msra.mxu0 0.0
    %105 = vmatprep.subr.mxu0 0.0
    %106 = vmatpush1.msra.mxu0 %v77
    %107 = vmatprep.subr.mxu0 0.0
    %108 = vmatpush1.msra.mxu0 %v76
    %109 = vmatprep.subr.mxu0 0.0
    %110 = vmatpush1.msra.mxu0 %v75
    %111 = vmatprep.subr.mxu0 0.0
    %112 = vmatpush1.msra.mxu0 %v74
    %113 = vmatprep.subr.mxu0 0.0
    %114 = vmatpush1.msra.mxu0 %v73
    %115 = vmatprep.subr.mxu0 0.0
    %116 = vmatpush1.msra.mxu0 %v72
    %117 = vmatprep.subr.mxu0 0.0
    %118 = vmatpush1.msra.mxu0 %v71
    %119 = vmatprep.subr.mxu0 0.0
    %120 = vmatpush1.msra.mxu0 %v70
    %121 = vmatprep.subr.mxu0 0.0
    %122 = vmatpush2.msra.mxu0 0.0
    %123 = vmatprep.subr.mxu0 0.0
    %124 = vmatpush2.msra.mxu0 0.0
    %125 = vmatprep.subr.mxu0 0.0
    %126 = vmatpush2.msra.mxu0 0.0
    %127 = vmatprep.subr.mxu0 0.0
    %128 = vmatpush2.msra.mxu0 0.0
    %129 = vmatprep.subr.mxu0 0.0
    %130 = vmatpush2.msra.mxu0 0.0
    %131 = vmatprep.subr.mxu0 0.0
    %132 = vmatpush2.msra.mxu0 0.0
    %133 = vmatprep.subr.mxu0 0.0
    %134 = vmatpush2.msra.mxu0 0.0
    %135 = vmatprep.subr.mxu0 0.0
    %136 = vmatpush2.msra.mxu0 0.0
    %137 = vmatprep.subr.mxu0 0.0
    %138 = vmatpush2.msra.mxu0 0.0
    %139 = vmatprep.subr.mxu0 0.0
    %140 = vmatpush2.msra.mxu0 0.0
    %141 = vmatprep.subr.mxu0 0.0
    %142 = vmatpush2.msra.mxu0 0.0
    %143 = vmatprep.subr.mxu0 0.0
    %144 = vmatpush2.msra.mxu0 0.0
    %145 = vmatprep.subr.mxu0 0.0
    %146 = vmatpush2.msra.mxu0 0.0
    %147 = vmatprep.subr.mxu0 0.0
    %148 = vmatpush2.msra.mxu0 0.0
    %149 = vmatprep.subr.mxu0 0.0
    %150 = vmatpush2.msra.mxu0 0.0
    %151 = vmatprep.subr.mxu0 0.0
    %152 = vmatpush2.msra.mxu0 0.0
    %153 = vmatprep.mubr.f32.mxu0 0.0
    %154 = vmatmul.mubr.f32.gmra.mxu0 %v87
    %v155 = vpop.f32.mrf.mxu0
    %v156 = vadd.f32 %v83, %v155
    %v157 = vpop.f32.mrf.mxu0
    %158 = vdwg.mxu0
    %v159 = vld [vmem:[%s6] sm:$0xff]
    %v160 = vld [vmem:[%s6 + $0x8] sm:$0xff]
    %v161 = vld [vmem:[%s6 + $0x10] sm:$0xff]
    %v162 = vld [vmem:[%s6 + $0x18] sm:$0xff]
    %v163 = vld [vmem:[%s6 + $0x20] sm:$0xff]
    %v164 = vld [vmem:[%s6 + $0x28] sm:$0xff]
    %v165 = vld [vmem:[%s6 + $0x30] sm:$0xff]
    %v166 = vld [vmem:[%s6 + $0x38] sm:$0xff]
    %vm167 = vcmask 261120
    %v169 = vsel %vm167, %v156, 0
    %171 = vmatprep.subr.mxu0 0.0
    %172 = vmatpush1.msra.mxu0 0.0
    %173 = vmatprep.subr.mxu0 0.0
    %174 = vmatpush1.msra.mxu0 0.0
    %175 = vmatprep.subr.mxu0 0.0
    %176 = vmatpush1.msra.mxu0 0.0
    %177 = vmatprep.subr.mxu0 0.0
    %178 = vmatpush1.msra.mxu0 0.0
    %179 = vmatprep.subr.mxu0 0.0
    %180 = vmatpush1.msra.mxu0 0.0
    %181 = vmatprep.subr.mxu0 0.0
    %182 = vmatpush1.msra.mxu0 0.0
    %183 = vmatprep.subr.mxu0 0.0
    %184 = vmatpush1.msra.mxu0 0.0
    %185 = vmatprep.subr.mxu0 0.0
    %186 = vmatpush1.msra.mxu0 0.0
    %187 = vmatprep.subr.mxu0 0.0
    %188 = vmatpush1.msra.mxu0 0.0
    %189 = vmatprep.subr.mxu0 0.0
    %190 = vmatpush1.msra.mxu0 0.0
    %191 = vmatprep.subr.mxu0 0.0
    %192 = vmatpush1.msra.mxu0 0.0
    %193 = vmatprep.subr.mxu0 0.0
    %194 = vmatpush1.msra.mxu0 0.0
    %195 = vmatprep.subr.mxu0 0.0
    %196 = vmatpush1.msra.mxu0 %v166
    %197 = vmatprep.subr.mxu0 0.0
    %198 = vmatpush1.msra.mxu0 %v165
    %199 = vmatprep.subr.mxu0 0.0
    %200 = vmatpush1.msra.mxu0 %v164
    %201 = vmatprep.subr.mxu0 0.0
    %202 = vmatpush1.msra.mxu0 %v163
    %203 = vmatprep.subr.mxu0 0.0
    %204 = vmatpush2.msra.mxu0 0.0
    %205 = vmatprep.subr.mxu0 0.0
    %206 = vmatpush2.msra.mxu0 0.0
    %207 = vmatprep.subr.mxu0 0.0
    %208 = vmatpush2.msra.mxu0 0.0
    %209 = vmatprep.subr.mxu0 0.0
    %210 = vmatpush2.msra.mxu0 0.0
    %211 = vmatprep.subr.mxu0 0.0
    %212 = vmatpush2.msra.mxu0 0.0
    %213 = vmatprep.subr.mxu0 0.0
    %214 = vmatpush2.msra.mxu0 0.0
    %215 = vmatprep.subr.mxu0 0.0
    %216 = vmatpush2.msra.mxu0 0.0
    %217 = vmatprep.subr.mxu0 0.0
    %218 = vmatpush2.msra.mxu0 0.0
    %219 = vmatprep.subr.mxu0 0.0
    %220 = vmatpush2.msra.mxu0 0.0
    %221 = vmatprep.subr.mxu0 0.0
    %222 = vmatpush2.msra.mxu0 0.0
    %223 = vmatprep.subr.mxu0 0.0
    %224 = vmatpush2.msra.mxu0 0.0
    %225 = vmatprep.subr.mxu0 0.0
    %226 = vmatpush2.msra.mxu0 0.0
    %227 = vmatprep.subr.mxu0 0.0
    %228 = vmatpush2.msra.mxu0 0.0
    %229 = vmatprep.subr.mxu0 0.0
    %230 = vmatpush2.msra.mxu0 0.0
    %231 = vmatprep.subr.mxu0 0.0
    %232 = vmatpush2.msra.mxu0 0.0
    %233 = vmatprep.subr.mxu0 0.0
    %234 = vmatpush2.msra.mxu0 0.0
    %235 = vmatprep.mubr.f32.mxu0 0.0
    %236 = vmatmul.mubr.f32.gmra.mxu0 %v169
    %v237 = vpop.f32.mrf.mxu0
    %v238 = vadd.f32 0.0, %v237
    %v239 = vpop.f32.mrf.mxu0
    %240 = vdwg.mxu0
    %v242 = vsel %vm167, %v66, 0
    %244 = vmatprep.subr.mxu0 0.0
    %245 = vmatpush1.msra.mxu0 0.0
    %246 = vmatprep.subr.mxu0 0.0
    %247 = vmatpush1.msra.mxu0 0.0
    %248 = vmatprep.subr.mxu0 0.0
    %249 = vmatpush1.msra.mxu0 0.0
    %250 = vmatprep.subr.mxu0 0.0
    %251 = vmatpush1.msra.mxu0 0.0
    %252 = vmatprep.subr.mxu0 0.0
    %253 = vmatpush1.msra.mxu0 0.0
    %254 = vmatprep.subr.mxu0 0.0
    %255 = vmatpush1.msra.mxu0 0.0
    %256 = vmatprep.subr.mxu0 0.0
    %257 = vmatpush1.msra.mxu0 0.0
    %258 = vmatprep.subr.mxu0 0.0
    %259 = vmatpush1.msra.mxu0 0.0
    %260 = vmatprep.subr.mxu0 0.0
    %261 = vmatpush1.msra.mxu0 0.0
    %262 = vmatprep.subr.mxu0 0.0
    %263 = vmatpush1.msra.mxu0 0.0
    %264 = vmatprep.subr.mxu0 0.0
    %265 = vmatpush1.msra.mxu0 0.0
    %266 = vmatprep.subr.mxu0 0.0
    %267 = vmatpush1.msra.mxu0 0.0
    %268 = vmatprep.subr.mxu0 0.0
    %269 = vmatpush1.msra.mxu0 %v162
    %270 = vmatprep.subr.mxu0 0.0
    %271 = vmatpush1.msra.mxu0 %v161
    %272 = vmatprep.subr.mxu0 0.0
    %273 = vmatpush1.msra.mxu0 %v160
    %274 = vmatprep.subr.mxu0 0.0
    %275 = vmatpush1.msra.mxu0 %v159
    %276 = vmatprep.subr.mxu0 0.0
    %277 = vmatpush2.msra.mxu0 0.0
    %278 = vmatprep.subr.mxu0 0.0
    %279 = vmatpush2.msra.mxu0 0.0
    %280 = vmatprep.subr.mxu0 0.0
    %281 = vmatpush2.msra.mxu0 0.0
    %282 = vmatprep.subr.mxu0 0.0
    %283 = vmatpush2.msra.mxu0 0.0
    %284 = vmatprep.subr.mxu0 0.0
    %285 = vmatpush2.msra.mxu0 0.0
    %286 = vmatprep.subr.mxu0 0.0
    %287 = vmatpush2.msra.mxu0 0.0
    %288 = vmatprep.subr.mxu0 0.0
    %289 = vmatpush2.msra.mxu0 0.0
    %290 = vmatprep.subr.mxu0 0.0
    %291 = vmatpush2.msra.mxu0 0.0
    %292 = vmatprep.subr.mxu0 0.0
    %293 = vmatpush2.msra.mxu0 0.0
    %294 = vmatprep.subr.mxu0 0.0
    %295 = vmatpush2.msra.mxu0 0.0
    %296 = vmatprep.subr.mxu0 0.0
    %297 = vmatpush2.msra.mxu0 0.0
    %298 = vmatprep.subr.mxu0 0.0
    %299 = vmatpush2.msra.mxu0 0.0
    %300 = vmatprep.subr.mxu0 0.0
    %301 = vmatpush2.msra.mxu0 0.0
    %302 = vmatprep.subr.mxu0 0.0
    %303 = vmatpush2.msra.mxu0 0.0
    %304 = vmatprep.subr.mxu0 0.0
    %305 = vmatpush2.msra.mxu0 0.0
    %306 = vmatprep.subr.mxu0 0.0
    %307 = vmatpush2.msra.mxu0 0.0
    %308 = vmatprep.mubr.f32.mxu0 0.0
    %309 = vmatmul.mubr.f32.gmra.mxu0 %v242
    %v310 = vpop.f32.mrf.mxu0
    %v311 = vadd.f32 %v238, %v310
    %v312 = vpop.f32.mrf.mxu0
    %313 = vdwg.mxu0
    %v314 = vld [vmem:[%s7] sm:$0x1]
    %v316 = vlaneseq
    %v317 = vshrl.u32 %v316, 7
    %v318 = vsub.s32 0, %v317
    %v319 = vrot.slane %v314, %v318
    %v321 = vadd.f32 %v311, %v319
    %v322 = vld [vmem:[%s8] sm:$0x1]
    %v324 = vlaneseq
    %v325 = vshrl.u32 %v324, 7
    %v326 = vsub.s32 0, %v325
    %v327 = vrot.slane %v322, %v326
    %v329 = vmul.f32 %v321, %v327
    %v332 = vunpack.c.l.s4 1966171168
    %v333 = vunpack.c.0.s8 %v332
    %v334 = vlaneseq
    %v335 = vshrl.u32 %v334, 7
    %v336 = vsub.s32 %v333, %v335
    %v337 = vrot.slane %v329, %v336
    %v338 = vcombine.high %v337, %v337
    %v340 = vunpack.c.l.s4 1966171168
    %v341 = vunpack.c.0.s8 %v340
    %v342 = vlaneseq
    %v343 = vshrl.u32 %v342, 7
    %v344 = vsub.s32 %v341, %v343
    %v345 = vrot.slane %v337, %v344
    %v347 = vunpack.c.l.s4 1966171168
    %v348 = vunpack.c.0.s8 %v347
    %v349 = vlaneseq
    %v350 = vshrl.u32 %v349, 7
    %v351 = vsub.s32 %v348, %v350
    %v352 = vrot.slane %v338, %v351
    %v353 = vlaneseq
    %v354 = vshrl.u32 %v353, 7
    %v355 = vsub.s32 0, %v354
    %v356 = vrot.slane %v345, %v355
    %v357 = vlaneseq
    %v358 = vshrl.u32 %v357, 7
    %v359 = vsub.s32 0, %v358
    %v360 = vrot.slane %v352, %v359
    %v363 = vmul.f32 %v356, %v68
    %v364 = vmul.f32 %v360, %v69
    %v365 = vsel %vm167, %v363, 0.0
    %366 = vadd.xlane.f32.xlu0 %v365
    %v367 = vpop.xlane.xlu0 %366
    %v368 = vsel %vm167, %v364, 0.0
    %369 = vadd.xlane.f32.xlu0 %v368
    %v370 = vpop.xlane.xlu0 %369
    %v373 = vlaneseq
    %v374 = vand.u32 %v373, 127
    %v375 = vlaneseq
    %v376 = vshrl.u32 %v375, 7
    %v377 = vsub.s32 %v374, %v376
    %v378 = vrot.slane %v367, %v377
    %v379 = vlaneseq
    %v380 = vshrl.u32 %v379, 7
    %v381 = vsub.s32 %v374, %v380
    %v382 = vrot.slane %v370, %v381
    %vm383 = vcmask 1041409
    %v384 = vsel %vm383, %v382, %v378
    %vm386 = vcmask 58368
    %v387 = vsel %vm386, %v384, -inf
    %388 = vmax.xlane.f32.xlu0 %v387
    %v389 = vpop.xlane.xlu0 %388
    %v391 = vlaneseq
    %v392 = vshrl.u32 %v391, 7
    %v393 = vsub.s32 0, %v392
    %v394 = vrot.slane %v389, %v393
    %v395 = vlaneseq
    %v396 = vshrl.u32 %v395, 7
    %v397 = vsub.s32 1, %v396
    %v398 = vrot.slane %v389, %v397
    %v401 = vsub.f32 %v367, %v394
    %v402 = vsub.f32 %v370, %v398
    %v403 = vmul.f32 %v401, 1.442695
    %v404 = vpow.pop %v403
    %v405 = vmul.f32 %v402, 1.442695
    %v406 = vpow.pop %v405
    %409 = vset.pattern.permute.xlu0 0
    %410 = vperm.xlu0 %409, %v404
    %v411 = vpop.permute.xlu0 %410
    %412 = vset.pattern.permute.xlu0 0
    %413 = vperm.xlu0 %412, %v406
    %v414 = vpop.permute.xlu0 %413
    %v415 = vlaneseq
    %v416 = vshrl.u32 %v415, 7
    %v417 = vsub.s32 %v374, %v416
    %v418 = vrot.slane %v411, %v417
    %v419 = vlaneseq
    %v420 = vshrl.u32 %v419, 7
    %v421 = vsub.s32 %v374, %v420
    %v422 = vrot.slane %v414, %v421
    %v423 = vsel %vm383, %v422, %v418
    %v425 = vsel %vm386, %v423, 0.0
    %426 = vadd.xlane.f32.xlu0 %v425
    %v427 = vpop.xlane.xlu0 %426
    %v428 = vrcp.pop %v427
    %v430 = vlaneseq
    %v431 = vshrl.u32 %v430, 7
    %v432 = vsub.s32 0, %v431
    %v433 = vrot.slane %v428, %v432
    %v434 = vlaneseq
    %v435 = vshrl.u32 %v434, 7
    %v436 = vsub.s32 1, %v435
    %v437 = vrot.slane %v428, %v436
    %v440 = vmul.f32 %v404, %v433
    %v441 = vmul.f32 %v406, %v437
    %443 = vset.pattern.permute.xlu0 0
    %444 = vperm.xlu0 %443, %v440
    %v445 = vpop.permute.xlu0 %444
    %448 = vset.pattern.permute.xlu0 0
    %449 = vperm.xlu0 %448, %v441
    %v450 = vpop.permute.xlu0 %449
    %v452 = vmul.f32 %v445, %v68
    %v453 = vmul.f32 %v450, %v69
    %v454 = vsel %vm167, %v452, 0.0
    %v455 = vrot.slane %v454, 4
    %v456 = vadd.f32 %v454, %v455
    %v457 = vrot.slane %v456, 2
    %v458 = vadd.f32 %v456, %v457
    %v459 = vrot.slane %v458, 1
    %v460 = vadd.f32 %v458, %v459
    %v461 = vsel %vm167, %v453, 0.0
    %v462 = vrot.slane %v461, 4
    %v463 = vadd.f32 %v461, %v462
    %v464 = vrot.slane %v463, 2
    %v465 = vadd.f32 %v463, %v464
    %v466 = vrot.slane %v465, 1
    %v467 = vadd.f32 %v465, %v466
    %v470 = vsel %vm383, %v467, %v460
    %vm472 = vcmask 254976
    %473 = vst.msk [vmem:[#allocation4] sm:$0x3] %vm472, %v470
    // Predicated region
    $region34: #{tpu_custom_call.1} parent=1 // pred_check
      _
    $region35: #{tpu_custom_call.1} parent=1 // pred_check_branch
      %475 = sbr.rel (0) target = $region37
    $region36: #{tpu_custom_call.1} parent=1 // pred_region
      %s477 = ssub.s32 32, 32
      %478 = vsyncadd [#allocation5], %s477
      %s480 = sshll.u32 [#allocation4], 4
      %s481 = int_to_ptr.vmem [resolvable:$true] %s480
      %483 = dma.vmem_to_hbm [thread:$0]  %s481, 32, %s9, [#allocation5]
    $region37: #{tpu_custom_call.1} parent=1 // pred_fallthru
      _
    // Predicated region
    $region38: #{tpu_custom_call.1} parent=1 // pred_check
      _
    $region39: #{tpu_custom_call.1} parent=1 // pred_check_branch
      %485 = sbr.rel (0) target = $region41
    $region40: #{tpu_custom_call.1} parent=1 // pred_region
      %486 = dma.done [#allocation5], 32
    $region41: #{tpu_custom_call.1} parent=1 // pred_fallthru
      _
    %487 = vsyncpa [#allocation5], 1

// kernel: tpu_custom_call.1
$region0: #{tpu_custom_call.1}
  #allocation0 [shape = 'u32[]', space=smem, size = 0x4, offset = 0x4, fixed_abs, tag = 'smem constant byte address 0x4 - core index']
  #allocation1 [shape = 'u32[144,128]{1,0:T(1,128)}', space=vmem, size = 0x12000, scoped, tag = 'internal scratch']
  #allocation2 [shape = 's32[1]{0}', space=sflag, size = 0x4, scoped, tag = 'scoped memory for tpu_custom_call.1']
  #allocation3 [shape = 's32[1]{0:T(128)S(6)}', space=smem, size = 0x200, scoped, tag = 'prefetched SMEM operand 0']
  %s0 = inlined_call_operand.<no memory space> [shape: s32[1], index: 0, kind: input, shape index: {}]
  %s1 = inlined_call_operand.vmem [shape: f32[2,32], index: 1, kind: input, shape index: {}]
  %s2 = inlined_call_operand.vmem [shape: f32[2,8,32], index: 2, kind: input, shape index: {}]
  %s3 = inlined_call_operand.vmem [shape: f32[2,64], index: 3, kind: input, shape index: {}]
  %s4 = inlined_call_operand.vmem [shape: f32[3,64,32], index: 4, kind: input, shape index: {}]
  %s5 = inlined_call_operand.vmem [shape: f32[3,1,32], index: 5, kind: input, shape index: {}]
  %s6 = inlined_call_operand.vmem [shape: f32[64,32], index: 6, kind: input, shape index: {}]
  %s7 = inlined_call_operand.vmem [shape: f32[1,32], index: 7, kind: input, shape index: {}]
  %s8 = inlined_call_operand.vmem [shape: f32[1,32], index: 8, kind: input, shape index: {}]
  %s9 = inlined_call_operand.hbm [shape: f32[2,32], index: 9, kind: output, shape index: {}]
  %s10 = sld [smem:[#allocation0]]
  $region42: #{tpu_custom_call.1} parent=0
    _
  %s12 = ssub.s32 1, %s10
  %s13 = scalar_select 0, %s12, %s10
  %14 = sst [smem:[#allocation3]] %s0
  $region1: #{tpu_custom_call.1} parent=0
    #allocation4 [shape = 'u8[1024]{0}', space=vmem, size = 0x400, scoped, tag = 'output window, operand 0, single buffered']
    #allocation5 [shape = 's32[1]{0}', space=sflag, size = 0x4, scoped, tag = 'scoped memory for tpu_custom_call.1']
    %15 = vsyncpa [#allocation5], 0
    // Predicated region
    $region2: #{tpu_custom_call.1} parent=1 // pred_check
      _
    $region3: #{tpu_custom_call.1} parent=1 // pred_check_branch
      %17 = sbr.rel (0) target = $region5
    $region4: #{tpu_custom_call.1} parent=1 // pred_region
      _
    $region5: #{tpu_custom_call.1} parent=1 // pred_fallthru
      _
    // Predicated region
    $region6: #{tpu_custom_call.1} parent=1 // pred_check
      _
    $region7: #{tpu_custom_call.1} parent=1 // pred_check_branch
      %19 = sbr.rel (0) target = $region9
    $region8: #{tpu_custom_call.1} parent=1 // pred_region
      _
    $region9: #{tpu_custom_call.1} parent=1 // pred_fallthru
      _
    // Predicated region
    $region10: #{tpu_custom_call.1} parent=1 // pred_check
      _
    $region11: #{tpu_custom_call.1} parent=1 // pred_check_branch
      %21 = sbr.rel (0) target = $region13
    $region12: #{tpu_custom_call.1} parent=1 // pred_region
      _
    $region13: #{tpu_custom_call.1} parent=1 // pred_fallthru
      _
    // Predicated region
    $region14: #{tpu_custom_call.1} parent=1 // pred_check
      _
    $region15: #{tpu_custom_call.1} parent=1 // pred_check_branch
      %23 = sbr.rel (0) target = $region17
    $region16: #{tpu_custom_call.1} parent=1 // pred_region
      %s24 = sld [smem:[#allocation3]]
      %p25 = scmp.lt.s32.totalorder %s24, 2
      %s26 = scalar_select %p25, %s24, 2
      %s27 = smul.addr %s26, 8
      %s28 = smul.addr %s27, 8
      %s29 = scalar_lea.vmem %s4, %s28
      %s30 = sld [smem:[#allocation3]]
    $region17: #{tpu_custom_call.1} parent=1 // pred_fallthru
      _
    // Predicated region
    $region18: #{tpu_custom_call.1} parent=1 // pred_check
      _
    $region19: #{tpu_custom_call.1} parent=1 // pred_check_branch
      %32 = sbr.rel (0) target = $region21
    $region20: #{tpu_custom_call.1} parent=1 // pred_region
      %s33 = sld [smem:[#allocation3]]
      %p34 = scmp.lt.s32.totalorder %s33, 2
      %s35 = scalar_select %p34, %s33, 2
      %s36 = scalar_lea.vmem %s5, %s35
      %s37 = sld [smem:[#allocation3]]
    $region21: #{tpu_custom_call.1} parent=1 // pred_fallthru
      _
    // Predicated region
    $region22: #{tpu_custom_call.1} parent=1 // pred_check
      _
    $region23: #{tpu_custom_call.1} parent=1 // pred_check_branch
      %39 = sbr.rel (0) target = $region25
    $region24: #{tpu_custom_call.1} parent=1 // pred_region
      _
    $region25: #{tpu_custom_call.1} parent=1 // pred_fallthru
      _
    // Predicated region
    $region26: #{tpu_custom_call.1} parent=1 // pred_check
      _
    $region27: #{tpu_custom_call.1} parent=1 // pred_check_branch
      %41 = sbr.rel (0) target = $region29
    $region28: #{tpu_custom_call.1} parent=1 // pred_region
      _
    $region29: #{tpu_custom_call.1} parent=1 // pred_fallthru
      _
    // Predicated region
    $region30: #{tpu_custom_call.1} parent=1 // pred_check
      _
    $region31: #{tpu_custom_call.1} parent=1 // pred_check_branch
      %43 = sbr.rel (0) target = $region33
    $region32: #{tpu_custom_call.1} parent=1 // pred_region
      _
    $region33: #{tpu_custom_call.1} parent=1 // pred_fallthru
      _
    %s44 = sld [smem:[#allocation3]]
    %p45 = scmp.lt.s32.totalorder %s44, 2
    %s46 = scalar_select %p45, %s44, 2
    %s47 = smul.addr %s46, 8
    %s48 = smul.addr %s47, 8
    %s49 = scalar_lea.vmem %s4, %s48
    %s50 = sld [smem:[#allocation3]]
    %p51 = scmp.lt.s32.totalorder %s50, 2
    %s52 = scalar_select %p51, %s50, 2
    %s53 = scalar_lea.vmem %s5, %s52
    %s54 = sld [smem:[#allocation3]]
    %p55 = scmp.lt.s32.totalorder %s54, 2
    %s56 = scalar_select %p55, %s54, 2
    %s57 = smul.addr %s56, 8
    %s58 = smul.addr %s57, 8
    %s59 = scalar_lea.vmem %s4, %s58
    %s60 = sld [smem:[#allocation3]]
    %s61 = sld [smem:[#allocation3]]
    %p62 = scmp.lt.s32.totalorder %s61, 2
    %s63 = scalar_select %p62, %s61, 2
    %s64 = scalar_lea.vmem %s5, %s63
    %s65 = sld [smem:[#allocation3]]
    %v66 = vld [vmem:[%s1] sm:$0x3]
    %v67 = vld [vmem:[%s3] sm:$0x3]
    %v68 = vld [vmem:[%s2] sm:$0xff]
    %v69 = vld [vmem:[%s2 + $0x8] sm:$0xff]
    %v70 = vld [vmem:[%s59] sm:$0xff]
    %v71 = vld [vmem:[%s59 + $0x8] sm:$0xff]
    %v72 = vld [vmem:[%s59 + $0x10] sm:$0xff]
    %v73 = vld [vmem:[%s59 + $0x18] sm:$0xff]
    %v74 = vld [vmem:[%s59 + $0x20] sm:$0xff]
    %v75 = vld [vmem:[%s59 + $0x28] sm:$0xff]
    %v76 = vld [vmem:[%s59 + $0x30] sm:$0xff]
    %v77 = vld [vmem:[%s59 + $0x38] sm:$0xff]
    %v78 = vld [vmem:[%s64] sm:$0x1]
    %v80 = vlaneseq
    %v81 = vshrl.u32 %v80, 7
    %v82 = vsub.s32 0, %v81
    %v83 = vrot.slane %v78, %v82
    %vm85 = vcmask 523264
    %v87 = vsel %vm85, %v67, 0
    %89 = vmatprep.subr.mxu0 0.0
    %90 = vmatpush1.msra.mxu0 0.0
    %91 = vmatprep.subr.mxu0 0.0
    %92 = vmatpush1.msra.mxu0 0.0
    %93 = vmatprep.subr.mxu0 0.0
    %94 = vmatpush1.msra.mxu0 0.0
    %95 = vmatprep.subr.mxu0 0.0
    %96 = vmatpush1.msra.mxu0 0.0
    %97 = vmatprep.subr.mxu0 0.0
    %98 = vmatpush1.msra.mxu0 0.0
    %99 = vmatprep.subr.mxu0 0.0
    %100 = vmatpush1.msra.mxu0 0.0
    %101 = vmatprep.subr.mxu0 0.0
    %102 = vmatpush1.msra.mxu0 0.0
    %103 = vmatprep.subr.mxu0 0.0
    %104 = vmatpush1.msra.mxu0 0.0
    %105 = vmatprep.subr.mxu0 0.0
    %106 = vmatpush1.msra.mxu0 %v77
    %107 = vmatprep.subr.mxu0 0.0
    %108 = vmatpush1.msra.mxu0 %v76
    %109 = vmatprep.subr.mxu0 0.0
    %110 = vmatpush1.msra.mxu0 %v75
    %111 = vmatprep.subr.mxu0 0.0
    %112 = vmatpush1.msra.mxu0 %v74
    %113 = vmatprep.subr.mxu0 0.0
    %114 = vmatpush1.msra.mxu0 %v73
    %115 = vmatprep.subr.mxu0 0.0
    %116 = vmatpush1.msra.mxu0 %v72
    %117 = vmatprep.subr.mxu0 0.0
    %118 = vmatpush1.msra.mxu0 %v71
    %119 = vmatprep.subr.mxu0 0.0
    %120 = vmatpush1.msra.mxu0 %v70
    %121 = vmatprep.subr.mxu0 0.0
    %122 = vmatpush2.msra.mxu0 0.0
    %123 = vmatprep.subr.mxu0 0.0
    %124 = vmatpush2.msra.mxu0 0.0
    %125 = vmatprep.subr.mxu0 0.0
    %126 = vmatpush2.msra.mxu0 0.0
    %127 = vmatprep.subr.mxu0 0.0
    %128 = vmatpush2.msra.mxu0 0.0
    %129 = vmatprep.subr.mxu0 0.0
    %130 = vmatpush2.msra.mxu0 0.0
    %131 = vmatprep.subr.mxu0 0.0
    %132 = vmatpush2.msra.mxu0 0.0
    %133 = vmatprep.subr.mxu0 0.0
    %134 = vmatpush2.msra.mxu0 0.0
    %135 = vmatprep.subr.mxu0 0.0
    %136 = vmatpush2.msra.mxu0 0.0
    %137 = vmatprep.subr.mxu0 0.0
    %138 = vmatpush2.msra.mxu0 0.0
    %139 = vmatprep.subr.mxu0 0.0
    %140 = vmatpush2.msra.mxu0 0.0
    %141 = vmatprep.subr.mxu0 0.0
    %142 = vmatpush2.msra.mxu0 0.0
    %143 = vmatprep.subr.mxu0 0.0
    %144 = vmatpush2.msra.mxu0 0.0
    %145 = vmatprep.subr.mxu0 0.0
    %146 = vmatpush2.msra.mxu0 0.0
    %147 = vmatprep.subr.mxu0 0.0
    %148 = vmatpush2.msra.mxu0 0.0
    %149 = vmatprep.subr.mxu0 0.0
    %150 = vmatpush2.msra.mxu0 0.0
    %151 = vmatprep.subr.mxu0 0.0
    %152 = vmatpush2.msra.mxu0 0.0
    %153 = vmatprep.mubr.f32.mxu0 0.0
    %154 = vmatmul.mubr.f32.gmra.mxu0 %v87
    %v155 = vpop.f32.mrf.mxu0
    %v156 = vadd.f32 %v83, %v155
    %v157 = vpop.f32.mrf.mxu0
    %158 = vdwg.mxu0
    %v159 = vld [vmem:[%s6] sm:$0xff]
    %v160 = vld [vmem:[%s6 + $0x8] sm:$0xff]
    %v161 = vld [vmem:[%s6 + $0x10] sm:$0xff]
    %v162 = vld [vmem:[%s6 + $0x18] sm:$0xff]
    %v163 = vld [vmem:[%s6 + $0x20] sm:$0xff]
    %v164 = vld [vmem:[%s6 + $0x28] sm:$0xff]
    %v165 = vld [vmem:[%s6 + $0x30] sm:$0xff]
    %v166 = vld [vmem:[%s6 + $0x38] sm:$0xff]
    %vm167 = vcmask 261120
    %v169 = vsel %vm167, %v156, 0
    %171 = vmatprep.subr.mxu0 0.0
    %172 = vmatpush1.msra.mxu0 0.0
    %173 = vmatprep.subr.mxu0 0.0
    %174 = vmatpush1.msra.mxu0 0.0
    %175 = vmatprep.subr.mxu0 0.0
    %176 = vmatpush1.msra.mxu0 0.0
    %177 = vmatprep.subr.mxu0 0.0
    %178 = vmatpush1.msra.mxu0 0.0
    %179 = vmatprep.subr.mxu0 0.0
    %180 = vmatpush1.msra.mxu0 0.0
    %181 = vmatprep.subr.mxu0 0.0
    %182 = vmatpush1.msra.mxu0 0.0
    %183 = vmatprep.subr.mxu0 0.0
    %184 = vmatpush1.msra.mxu0 0.0
    %185 = vmatprep.subr.mxu0 0.0
    %186 = vmatpush1.msra.mxu0 0.0
    %187 = vmatprep.subr.mxu0 0.0
    %188 = vmatpush1.msra.mxu0 0.0
    %189 = vmatprep.subr.mxu0 0.0
    %190 = vmatpush1.msra.mxu0 0.0
    %191 = vmatprep.subr.mxu0 0.0
    %192 = vmatpush1.msra.mxu0 0.0
    %193 = vmatprep.subr.mxu0 0.0
    %194 = vmatpush1.msra.mxu0 0.0
    %195 = vmatprep.subr.mxu0 0.0
    %196 = vmatpush1.msra.mxu0 %v166
    %197 = vmatprep.subr.mxu0 0.0
    %198 = vmatpush1.msra.mxu0 %v165
    %199 = vmatprep.subr.mxu0 0.0
    %200 = vmatpush1.msra.mxu0 %v164
    %201 = vmatprep.subr.mxu0 0.0
    %202 = vmatpush1.msra.mxu0 %v163
    %203 = vmatprep.subr.mxu0 0.0
    %204 = vmatpush2.msra.mxu0 0.0
    %205 = vmatprep.subr.mxu0 0.0
    %206 = vmatpush2.msra.mxu0 0.0
    %207 = vmatprep.subr.mxu0 0.0
    %208 = vmatpush2.msra.mxu0 0.0
    %209 = vmatprep.subr.mxu0 0.0
    %210 = vmatpush2.msra.mxu0 0.0
    %211 = vmatprep.subr.mxu0 0.0
    %212 = vmatpush2.msra.mxu0 0.0
    %213 = vmatprep.subr.mxu0 0.0
    %214 = vmatpush2.msra.mxu0 0.0
    %215 = vmatprep.subr.mxu0 0.0
    %216 = vmatpush2.msra.mxu0 0.0
    %217 = vmatprep.subr.mxu0 0.0
    %218 = vmatpush2.msra.mxu0 0.0
    %219 = vmatprep.subr.mxu0 0.0
    %220 = vmatpush2.msra.mxu0 0.0
    %221 = vmatprep.subr.mxu0 0.0
    %222 = vmatpush2.msra.mxu0 0.0
    %223 = vmatprep.subr.mxu0 0.0
    %224 = vmatpush2.msra.mxu0 0.0
    %225 = vmatprep.subr.mxu0 0.0
    %226 = vmatpush2.msra.mxu0 0.0
    %227 = vmatprep.subr.mxu0 0.0
    %228 = vmatpush2.msra.mxu0 0.0
    %229 = vmatprep.subr.mxu0 0.0
    %230 = vmatpush2.msra.mxu0 0.0
    %231 = vmatprep.subr.mxu0 0.0
    %232 = vmatpush2.msra.mxu0 0.0
    %233 = vmatprep.subr.mxu0 0.0
    %234 = vmatpush2.msra.mxu0 0.0
    %235 = vmatprep.mubr.f32.mxu0 0.0
    %236 = vmatmul.mubr.f32.gmra.mxu0 %v169
    %v237 = vpop.f32.mrf.mxu0
    %v238 = vadd.f32 0.0, %v237
    %v239 = vpop.f32.mrf.mxu0
    %240 = vdwg.mxu0
    %v242 = vsel %vm167, %v66, 0
    %244 = vmatprep.subr.mxu0 0.0
    %245 = vmatpush1.msra.mxu0 0.0
    %246 = vmatprep.subr.mxu0 0.0
    %247 = vmatpush1.msra.mxu0 0.0
    %248 = vmatprep.subr.mxu0 0.0
    %249 = vmatpush1.msra.mxu0 0.0
    %250 = vmatprep.subr.mxu0 0.0
    %251 = vmatpush1.msra.mxu0 0.0
    %252 = vmatprep.subr.mxu0 0.0
    %253 = vmatpush1.msra.mxu0 0.0
    %254 = vmatprep.subr.mxu0 0.0
    %255 = vmatpush1.msra.mxu0 0.0
    %256 = vmatprep.subr.mxu0 0.0
    %257 = vmatpush1.msra.mxu0 0.0
    %258 = vmatprep.subr.mxu0 0.0
    %259 = vmatpush1.msra.mxu0 0.0
    %260 = vmatprep.subr.mxu0 0.0
    %261 = vmatpush1.msra.mxu0 0.0
    %262 = vmatprep.subr.mxu0 0.0
    %263 = vmatpush1.msra.mxu0 0.0
    %264 = vmatprep.subr.mxu0 0.0
    %265 = vmatpush1.msra.mxu0 0.0
    %266 = vmatprep.subr.mxu0 0.0
    %267 = vmatpush1.msra.mxu0 0.0
    %268 = vmatprep.subr.mxu0 0.0
    %269 = vmatpush1.msra.mxu0 %v162
    %270 = vmatprep.subr.mxu0 0.0
    %271 = vmatpush1.msra.mxu0 %v161
    %272 = vmatprep.subr.mxu0 0.0
    %273 = vmatpush1.msra.mxu0 %v160
    %274 = vmatprep.subr.mxu0 0.0
    %275 = vmatpush1.msra.mxu0 %v159
    %276 = vmatprep.subr.mxu0 0.0
    %277 = vmatpush2.msra.mxu0 0.0
    %278 = vmatprep.subr.mxu0 0.0
    %279 = vmatpush2.msra.mxu0 0.0
    %280 = vmatprep.subr.mxu0 0.0
    %281 = vmatpush2.msra.mxu0 0.0
    %282 = vmatprep.subr.mxu0 0.0
    %283 = vmatpush2.msra.mxu0 0.0
    %284 = vmatprep.subr.mxu0 0.0
    %285 = vmatpush2.msra.mxu0 0.0
    %286 = vmatprep.subr.mxu0 0.0
    %287 = vmatpush2.msra.mxu0 0.0
    %288 = vmatprep.subr.mxu0 0.0
    %289 = vmatpush2.msra.mxu0 0.0
    %290 = vmatprep.subr.mxu0 0.0
    %291 = vmatpush2.msra.mxu0 0.0
    %292 = vmatprep.subr.mxu0 0.0
    %293 = vmatpush2.msra.mxu0 0.0
    %294 = vmatprep.subr.mxu0 0.0
    %295 = vmatpush2.msra.mxu0 0.0
    %296 = vmatprep.subr.mxu0 0.0
    %297 = vmatpush2.msra.mxu0 0.0
    %298 = vmatprep.subr.mxu0 0.0
    %299 = vmatpush2.msra.mxu0 0.0
    %300 = vmatprep.subr.mxu0 0.0
    %301 = vmatpush2.msra.mxu0 0.0
    %302 = vmatprep.subr.mxu0 0.0
    %303 = vmatpush2.msra.mxu0 0.0
    %304 = vmatprep.subr.mxu0 0.0
    %305 = vmatpush2.msra.mxu0 0.0
    %306 = vmatprep.subr.mxu0 0.0
    %307 = vmatpush2.msra.mxu0 0.0
    %308 = vmatprep.mubr.f32.mxu0 0.0
    %309 = vmatmul.mubr.f32.gmra.mxu0 %v242
    %v310 = vpop.f32.mrf.mxu0
    %v311 = vadd.f32 %v238, %v310
    %v312 = vpop.f32.mrf.mxu0
    %313 = vdwg.mxu0
    %v314 = vld [vmem:[%s7] sm:$0x1]
    %v316 = vlaneseq
    %v317 = vshrl.u32 %v316, 7
    %v318 = vsub.s32 0, %v317
    %v319 = vrot.slane %v314, %v318
    %v321 = vadd.f32 %v311, %v319
    %v322 = vld [vmem:[%s8] sm:$0x1]
    %v324 = vlaneseq
    %v325 = vshrl.u32 %v324, 7
    %v326 = vsub.s32 0, %v325
    %v327 = vrot.slane %v322, %v326
    %v329 = vmul.f32 %v321, %v327
    %v332 = vunpack.c.l.s4 1966171168
    %v333 = vunpack.c.0.s8 %v332
    %v334 = vlaneseq
    %v335 = vshrl.u32 %v334, 7
    %v336 = vsub.s32 %v333, %v335
    %v337 = vrot.slane %v329, %v336
    %v338 = vcombine.high %v337, %v337
    %v340 = vunpack.c.l.s4 1966171168
    %v341 = vunpack.c.0.s8 %v340
    %v342 = vlaneseq
    %v343 = vshrl.u32 %v342, 7
    %v344 = vsub.s32 %v341, %v343
    %v345 = vrot.slane %v337, %v344
    %v347 = vunpack.c.l.s4 1966171168
    %v348 = vunpack.c.0.s8 %v347
    %v349 = vlaneseq
    %v350 = vshrl.u32 %v349, 7
    %v351 = vsub.s32 %v348, %v350
    %v352 = vrot.slane %v338, %v351
    %v353 = vlaneseq
    %v354 = vshrl.u32 %v353, 7
    %v355 = vsub.s32 0, %v354
    %v356 = vrot.slane %v345, %v355
    %v357 = vlaneseq
    %v358 = vshrl.u32 %v357, 7
    %v359 = vsub.s32 0, %v358
    %v360 = vrot.slane %v352, %v359
    %v363 = vmul.f32 %v356, %v68
    %v364 = vmul.f32 %v360, %v69
    %v365 = vsel %vm167, %v363, 0.0
    %366 = vadd.xlane.f32.xlu0 %v365
    %v367 = vpop.xlane.xlu0 %366
    %v368 = vsel %vm167, %v364, 0.0
    %369 = vadd.xlane.f32.xlu0 %v368
    %v370 = vpop.xlane.xlu0 %369
    %v373 = vlaneseq
    %v374 = vand.u32 %v373, 127
    %v375 = vlaneseq
    %v376 = vshrl.u32 %v375, 7
    %v377 = vsub.s32 %v374, %v376
    %v378 = vrot.slane %v367, %v377
    %v379 = vlaneseq
    %v380 = vshrl.u32 %v379, 7
    %v381 = vsub.s32 %v374, %v380
    %v382 = vrot.slane %v370, %v381
    %vm383 = vcmask 1041409
    %v384 = vsel %vm383, %v382, %v378
    %vm386 = vcmask 58368
    %v387 = vsel %vm386, %v384, -inf
    %388 = vmax.xlane.f32.xlu0 %v387
    %v389 = vpop.xlane.xlu0 %388
    %v391 = vlaneseq
    %v392 = vshrl.u32 %v391, 7
    %v393 = vsub.s32 0, %v392
    %v394 = vrot.slane %v389, %v393
    %v395 = vlaneseq
    %v396 = vshrl.u32 %v395, 7
    %v397 = vsub.s32 1, %v396
    %v398 = vrot.slane %v389, %v397
    %v401 = vsub.f32 %v367, %v394
    %v402 = vsub.f32 %v370, %v398
    %v403 = vmul.f32 %v401, 1.442695
    %v404 = vpow.pop %v403
    %v405 = vmul.f32 %v402, 1.442695
    %v406 = vpow.pop %v405
    %409 = vset.pattern.permute.xlu0 0
    %410 = vperm.xlu0 %409, %v404
    %v411 = vpop.permute.xlu0 %410
    %412 = vset.pattern.permute.xlu0 0
    %413 = vperm.xlu0 %412, %v406
    %v414 = vpop.permute.xlu0 %413
    %v415 = vlaneseq
    %v416 = vshrl.u32 %v415, 7
    %v417 = vsub.s32 %v374, %v416
    %v418 = vrot.slane %v411, %v417
    %v419 = vlaneseq
    %v420 = vshrl.u32 %v419, 7
    %v421 = vsub.s32 %v374, %v420
    %v422 = vrot.slane %v414, %v421
    %v423 = vsel %vm383, %v422, %v418
    %v425 = vsel %vm386, %v423, 0.0
    %426 = vadd.xlane.f32.xlu0 %v425
    %v427 = vpop.xlane.xlu0 %426
    %v428 = vrcp.pop %v427
    %v430 = vlaneseq
    %v431 = vshrl.u32 %v430, 7
    %v432 = vsub.s32 0, %v431
    %v433 = vrot.slane %v428, %v432
    %v434 = vlaneseq
    %v435 = vshrl.u32 %v434, 7
    %v436 = vsub.s32 1, %v435
    %v437 = vrot.slane %v428, %v436
    %v440 = vmul.f32 %v404, %v433
    %v441 = vmul.f32 %v406, %v437
    %443 = vset.pattern.permute.xlu0 0
    %444 = vperm.xlu0 %443, %v440
    %v445 = vpop.permute.xlu0 %444
    %448 = vset.pattern.permute.xlu0 0
    %449 = vperm.xlu0 %448, %v441
    %v450 = vpop.permute.xlu0 %449
    %v452 = vmul.f32 %v445, %v68
    %v453 = vmul.f32 %v450, %v69
    %v454 = vsel %vm167, %v452, 0.0
    %v455 = vrot.slane %v454, 4
    %v456 = vadd.f32 %v454, %v455
    %v457 = vrot.slane %v456, 2
    %v458 = vadd.f32 %v456, %v457
    %v459 = vrot.slane %v458, 1
    %v460 = vadd.f32 %v458, %v459
    %v461 = vsel %vm167, %v453, 0.0
    %v462 = vrot.slane %v461, 4
    %v463 = vadd.f32 %v461, %v462
    %v464 = vrot.slane %v463, 2
    %v465 = vadd.f32 %v463, %v464
    %v466 = vrot.slane %v465, 1
    %v467 = vadd.f32 %v465, %v466
    %v470 = vsel %vm383, %v467, %v460
    %vm472 = vcmask 254976
    %473 = vst.msk [vmem:[#allocation4] sm:$0x3] %vm472, %v470
    // Predicated region
    $region34: #{tpu_custom_call.1} parent=1 // pred_check
      _
    $region35: #{tpu_custom_call.1} parent=1 // pred_check_branch
      %475 = sbr.rel (0) target = $region37
    $region36: #{tpu_custom_call.1} parent=1 // pred_region
      %s477 = ssub.s32 32, 32
      %478 = vsyncadd [#allocation5], %s477
      %s480 = sshll.u32 [#allocation4], 4
      %s481 = int_to_ptr.vmem [resolvable:$true] %s480
      %483 = dma.vmem_to_hbm [thread:$0]  %s481, 32, %s9, [#allocation5]
    $region37: #{tpu_custom_call.1} parent=1 // pred_fallthru
      _
    // Predicated region
    $region38: #{tpu_custom_call.1} parent=1 // pred_check
      _
    $region39: #{tpu_custom_call.1} parent=1 // pred_check_branch
      %485 = sbr.rel (0) target = $region41
    $region40: #{tpu_custom_call.1} parent=1 // pred_region
      %486 = dma.done [#allocation5], 32
    $region41: #{tpu_custom_call.1} parent=1 // pred_fallthru
      _
    %487 = vsyncpa [#allocation5], 1

</llo_original>
